<compile_context>
chip_gen: v7x
topology: tpu7x:2x2x1
jax: 0.10.0
libtpu: 0.0.40
codegen_flags: <defaults>
</compile_context>

<pallas_src>
import jax
import jax.numpy as jnp
from jax.experimental import pallas as pl
from jax.experimental.pallas import tpu as pltpu


# ----------------------------------------------------------------------------
# Pallas kernel: Y_tile = W_comb[s_b] @ X_tile + b_comb[s_b]
# ----------------------------------------------------------------------------
def _subject_block_kernel(order_ref, sidx_ref,   # scalar-prefetch (SMEM), unused in body
                          x_ref,                 # (C, T_TILE)  f32  raw input tile
                          w_ref,                 # (D1, C)      bf16 folded subject weight
                          b_ref,                 # (D1, 1)      f32  folded subject bias
                          o_ref):                # (D1, T_TILE) bf16 output tile
    del order_ref, sidx_ref  # only consumed by the index_maps
    x = x_ref[...].astype(jnp.bfloat16)          # VPU cast, hidden under DMA
    acc = jnp.dot(w_ref[...], x, preferred_element_type=jnp.float32)
    o_ref[...] = (acc + b_ref[...]).astype(o_ref.dtype)


# ----------------------------------------------------------------------------
# helpers
# ----------------------------------------------------------------------------
def _round_up(x, m):
    return ((x + m - 1) // m) * m


def _cdiv(a, b):
    return -(-a // b)


def _device_caps():
    """Per-architecture tiling / VMEM limits (conservative defaults)."""
    try:
        kind = jax.devices()[0].device_kind.lower()
    except Exception:  # pragma: no cover
        kind = ""
    if "v7" in kind:
        # 64 MiB VMEM per TC, 2 TensorCores/chip sharing HBM.
        return dict(tile_budget=24 << 20, tile_ceiling=8192,
                    vmem_hard=40 << 20, two_cores=True)
    # v5e / v6e (and default): 128 MiB VMEM, single TensorCore.
    return dict(tile_budget=48 << 20, tile_ceiling=16384,
                vmem_hard=96 << 20, two_cores=False)


# ----------------------------------------------------------------------------
# Wrapper: fold the linear chain, pick the tiling, launch the kernel
# ----------------------------------------------------------------------------
def subject_block_forward(X, subject_idxs, params, *, out_dtype=jnp.bfloat16):
    """X: (B, C, T) float32; subject_idxs: (B,) int32.

    Returns (B, D1, T) in `out_dtype` (bf16 by default — the kernel is
    HBM-bandwidth bound and the MXU inputs are bf16 already)."""
    B, C, T = X.shape
    D1 = params["w_conv"].shape[0]

    # --- batch-independent weight fold (tiny, plain f32 JAX) ------------------
    a = (params["z_real"] @ params["cos"] +
         params["z_imag"] @ params["sin"])                        # (D1, C)
    sa_wts = jax.nn.softmax(a, axis=-1)
    #   Y[b] = W_sub[s] @ (W_conv @ (SA @ X[b]) + b_conv) + b_sub[s]
    #        = (W_sub[s] @ W_conv @ SA) @ X[b] + (W_sub[s] @ b_conv + b_sub[s])
    w_shared = params["w_conv"] @ sa_wts                          # (D1, C)
    w_comb = jnp.einsum("sij,jc->sic", params["w_sub"],
                        w_shared).astype(jnp.bfloat16)            # (S, D1, C)
    b_comb = (jnp.einsum("sij,j->si", params["w_sub"], params["b_conv"])
              + params["b_sub"]).astype(jnp.float32)[..., None]   # (S, D1, 1)

    # --- subject grouping via scalar prefetch (no data movement of X) ---------
    order = jnp.argsort(subject_idxs).astype(jnp.int32)           # (B,)
    sidx_sorted = subject_idxs.astype(jnp.int32)[order]           # (B,)

    # --- tiling: pick T_TILE first, then pad T to a multiple of it ------------
    caps = _device_caps()
    out_bytes = jnp.dtype(out_dtype).itemsize
    t128 = _round_up(T, 128)
    # double-buffered X (f32) + output tiles per time column
    bytes_per_col = 2 * (4 * C + out_bytes * D1)
    cap = max(128, min(caps["tile_ceiling"],
                       (caps["tile_budget"] // bytes_per_col) // 128 * 128))
    T_TILE = min(cap, t128)
    if B == 1 and caps["two_cores"]:
        # keep both TensorCores busy: at least 2 grid steps along T
        while _cdiv(t128, T_TILE) < 2 and T_TILE > 128:
            T_TILE = _round_up(T_TILE // 2, 128)
    T_pad = _cdiv(T, T_TILE) * T_TILE
    grid = (B, T_pad // T_TILE)

    x_in = X if T_pad == T else jnp.pad(X, ((0, 0), (0, 0), (0, T_pad - T)))

    # --- VMEM limit & cost estimate -------------------------------------------
    x_tile_b = C * T_TILE * 4
    o_tile_b = D1 * T_TILE * out_bytes
    w_b = D1 * C * 2
    b_b = D1 * 4
    vmem_need = 2 * (x_tile_b + o_tile_b + w_b + b_b) + (4 << 20)
    vmem_limit = int(min(caps["vmem_hard"], max(32 << 20, vmem_need)))

    cost = pl.CostEstimate(
        flops=2 * B * D1 * C * T_pad,
        transcendentals=0,
        bytes_accessed=B * C * T_pad * 4 + B * (w_b + b_b)
                       + B * D1 * T_pad * out_bytes,
    )

    grid_spec = pltpu.PrefetchScalarGridSpec(
        num_scalar_prefetch=2,
        grid=grid,
        in_specs=[
            # X[order[b], :, t*T_TILE:(t+1)*T_TILE] -> kernel sees (C, T_TILE) f32
            pl.BlockSpec((pl.Squeezed(), C, T_TILE),
                         lambda b, t, order, sidx: (order[b], 0, t)),
            # W_comb[subject of sorted batch b]     -> kernel sees (D1, C) bf16
            pl.BlockSpec((pl.Squeezed(), D1, C),
                         lambda b, t, order, sidx: (sidx[b], 0, 0)),
            # b_comb[subject of sorted batch b]     -> kernel sees (D1, 1) f32
            pl.BlockSpec((pl.Squeezed(), D1, 1),
                         lambda b, t, order, sidx: (sidx[b], 0, 0)),
        ],
        out_specs=pl.BlockSpec((pl.Squeezed(), D1, T_TILE),
                               lambda b, t, order, sidx: (order[b], 0, t)),
    )

    out_pad = pl.pallas_call(
        _subject_block_kernel,
        out_shape=jax.ShapeDtypeStruct((B, D1, T_pad), out_dtype),
        grid_spec=grid_spec,
        compiler_params=pltpu.CompilerParams(
            dimension_semantics=("parallel", "parallel"),
            vmem_limit_bytes=vmem_limit),
        cost_estimate=cost,
    )(order, sidx_sorted, x_in, w_comb, b_comb)

    # Skipped entirely when T is a multiple of T_TILE; otherwise downstream
    # consumers could equally take the padded buffer to avoid the extra copy.
    return out_pad if T_pad == T else out_pad[:, :, :T]


# ----------------------------------------------------------------------------
# Pure-JAX reference (mirrors the PyTorch forward, eval-mode dropout = id)
# ----------------------------------------------------------------------------
def subject_block_reference(X, subject_idxs, params):
    a = (params["z_real"] @ params["cos"] +
         params["z_imag"] @ params["sin"])
    sa_wts = jax.nn.softmax(a, axis=-1)
    h = jnp.einsum("oi,bit->bot", sa_wts, X)
    h = jnp.einsum("oi,bit->bot", params["w_conv"], h) + params["b_conv"][None, :, None]
    w_s = params["w_sub"][subject_idxs]                    # (B, D1, D1)
    b_s = params["b_sub"][subject_idxs]                    # (B, D1)
    h = jnp.einsum("boi,bit->bot", w_s, h) + b_s[:, :, None]
    return h


# ----------------------------------------------------------------------------
# Deterministic parameter construction (shapes from the module __init__)
# ----------------------------------------------------------------------------
def make_params(key, num_subjects, D1, K, C):
    ks = jax.random.split(key, 8)
    # SpatialAttention: complex parameter z of shape (D1, K^2)
    z_real = jax.random.uniform(ks[0], (D1, K * K), dtype=jnp.float32)
    z_imag = jax.random.uniform(ks[1], (D1, K * K), dtype=jnp.float32)
    # sensor 2-D locations in [0, 1] and precomputed Fourier features
    loc = jax.random.uniform(ks[2], (C, 2), dtype=jnp.float32)
    kk, ll = jnp.meshgrid(jnp.arange(K, dtype=jnp.float32),
                          jnp.arange(K, dtype=jnp.float32), indexing="ij")
    kk, ll = kk.reshape(-1), ll.reshape(-1)                       # (K^2,)
    phi = 2.0 * jnp.pi * (jnp.outer(kk, loc[:, 0]) + jnp.outer(ll, loc[:, 1]))
    cos, sin = jnp.cos(phi), jnp.sin(phi)                         # (K^2, C)
    # shared Conv1d(D1 -> D1, kernel_size=1): weight (D1, D1, 1) -> (D1, D1)
    w_conv = (jax.random.uniform(ks[3], (D1, D1), dtype=jnp.float32) - 0.5) * 0.2
    b_conv = (jax.random.uniform(ks[4], (D1,), dtype=jnp.float32) - 0.5) * 0.2
    # per-subject Conv1d layers (one (D1, D1) weight + (D1,) bias each)
    w_sub = (jax.random.uniform(ks[5], (num_subjects, D1, D1), dtype=jnp.float32) - 0.5) * 0.2
    b_sub = (jax.random.uniform(ks[6], (num_subjects, D1), dtype=jnp.float32) - 0.5) * 0.2
    # (subject_matrix parameter exists in __init__ but is unused in forward)
    return dict(z_real=z_real, z_imag=z_imag, cos=cos, sin=sin,
                w_conv=w_conv, b_conv=b_conv, w_sub=w_sub, b_sub=b_sub)


if __name__ == "__main__":
    num_subjects, D1, K = 3, 32, 4
    B, C, T = 2, 16, 16   # batch, input sensors/channels, time steps

    key = jax.random.PRNGKey(0)
    k_x, k_s, k_p = jax.random.split(key, 3)

    X = jax.random.normal(k_x, (B, C, T), dtype=jnp.float32)
    subject_idxs = jax.random.randint(k_s, (B,), 0, num_subjects, dtype=jnp.int32)
    params = make_params(k_p, num_subjects, D1, K, C)

    out = jax.block_until_ready(subject_block_forward(X, subject_idxs, params))
    ref = subject_block_reference(X, subject_idxs, params)

    assert out.shape == (B, D1, T), out.shape
    # bf16 MXU inputs + bf16 output with f32 accumulation -> tolerance loosened
    # vs. the pure-f32 reference (the algebraic weight fold itself is exact).
    err = jnp.max(jnp.abs(out.astype(jnp.float32) - ref))
    assert jnp.allclose(out.astype(jnp.float32), ref, atol=2e-2, rtol=5e-2), (
        f"mismatch vs reference, max abs err = {float(err)}")

    print("KERNEL_OK")
</pallas_src>

<mosaic_0001>
module attributes {stable_mosaic.version = 11 : i64} {
  func.func @_subject_block_kernel(%arg0: i32, %arg1: i32, %arg2: memref<2xi32, #tpu.memory_space<smem>>, %arg3: memref<2xi32, #tpu.memory_space<smem>>, %arg4: memref<1x16x128xf32, #tpu.memory_space<vmem>>, %arg5: memref<1x32x16xbf16, #tpu.memory_space<vmem>>, %arg6: memref<1x32x1xf32, #tpu.memory_space<vmem>>, %arg7: memref<1x32x128xbf16, #tpu.memory_space<vmem>>) attributes {dimension_semantics = [#tpu.dimension_semantics<parallel>, #tpu.dimension_semantics<parallel>], iteration_bounds = array<i64: 2, 1>, scalar_prefetch = 2 : i64, scratch_operands = 0 : i64, tpu.core_type = #tpu.core_type<tc>, window_params = [{transform_indices = @transform_0, window_bounds = array<i64: 1, 16, 128>}, {transform_indices = @transform_1, window_bounds = array<i64: 1, 32, 16>}, {transform_indices = @transform_2, window_bounds = array<i64: 1, 32, 1>}, {transform_indices = @transform_3, window_bounds = array<i64: 1, 32, 128>}]} {
    %c0 = arith.constant 0 : index
    %c0_0 = arith.constant 0 : index
    %c0_1 = arith.constant 0 : index
    %0 = vector.load %arg4[%c0, %c0_0, %c0_1] : memref<1x16x128xf32, #tpu.memory_space<vmem>>, vector<1x16x128xf32>
    %1 = vector.shape_cast %0 : vector<1x16x128xf32> to vector<16x128xf32>
    %2 = arith.truncf %1 : vector<16x128xf32> to vector<16x128xbf16>
    %c0_2 = arith.constant 0 : index
    %c0_3 = arith.constant 0 : index
    %c0_4 = arith.constant 0 : index
    %3 = vector.load %arg5[%c0_2, %c0_3, %c0_4] : memref<1x32x16xbf16, #tpu.memory_space<vmem>>, vector<1x32x16xbf16>
    %4 = vector.shape_cast %3 : vector<1x32x16xbf16> to vector<32x16xbf16>
    %cst = arith.constant dense<0.000000e+00> : vector<32x128xf32>
    %5 = tpu.matmul %4, %2, %cst {dimension_numbers = #tpu.dot_dimension_numbers<[1], [0], [0], [1], [0, 0, 1, 1], [], []>} : vector<32x16xbf16>, vector<16x128xbf16>, vector<32x128xf32> -> vector<32x128xf32>
    %c0_5 = arith.constant 0 : index
    %c0_6 = arith.constant 0 : index
    %c0_7 = arith.constant 0 : index
    %6 = vector.load %arg6[%c0_5, %c0_6, %c0_7] : memref<1x32x1xf32, #tpu.memory_space<vmem>>, vector<1x32x1xf32>
    %7 = vector.shape_cast %6 : vector<1x32x1xf32> to vector<32x1xf32>
    %8 = vector.broadcast %7 : vector<32x1xf32> to vector<32x128xf32>
    %9 = arith.addf %5, %8 : vector<32x128xf32>
    %10 = arith.truncf %9 : vector<32x128xf32> to vector<32x128xbf16>
    %c0_8 = arith.constant 0 : index
    %c0_9 = arith.constant 0 : index
    %c0_10 = arith.constant 0 : index
    %11 = vector.load %arg7[%c0_8, %c0_9, %c0_10] : memref<1x32x128xbf16, #tpu.memory_space<vmem>>, vector<1x32x128xbf16>
    %12 = vector.shape_cast %11 : vector<1x32x128xbf16> to vector<32x128xbf16>
    %13 = vector.shape_cast %10 : vector<32x128xbf16> to vector<1x32x128xbf16>
    tpu.vector_store %arg7[%c0_8, %c0_9, %c0_10], %13 {strides = array<i32>} : memref<1x32x128xbf16, #tpu.memory_space<vmem>>, vector<1x32x128xbf16>,
    return
  }
  func.func @transform_0(%arg0: i32, %arg1: i32, %arg2: memref<2xi32, #tpu.memory_space<smem>>, %arg3: memref<2xi32, #tpu.memory_space<smem>>) -> (i32, i32, i32) {
    %0 = arith.index_cast %arg0 : i32 to index
    %1 = memref.load %arg2[%0] : memref<2xi32, #tpu.memory_space<smem>>
    %c0_i32 = arith.constant 0 : i32
    %c0_i32_0 = arith.constant 0 : i32
    return %1, %c0_i32, %arg1 : i32, i32, i32
  }
  func.func @transform_1(%arg0: i32, %arg1: i32, %arg2: memref<2xi32, #tpu.memory_space<smem>>, %arg3: memref<2xi32, #tpu.memory_space<smem>>) -> (i32, i32, i32) {
    %0 = arith.index_cast %arg0 : i32 to index
    %1 = memref.load %arg3[%0] : memref<2xi32, #tpu.memory_space<smem>>
    %c0_i32 = arith.constant 0 : i32
    %c0_i32_0 = arith.constant 0 : i32
    %c0_i32_1 = arith.constant 0 : i32
    return %1, %c0_i32, %c0_i32_0 : i32, i32, i32
  }
  func.func @transform_2(%arg0: i32, %arg1: i32, %arg2: memref<2xi32, #tpu.memory_space<smem>>, %arg3: memref<2xi32, #tpu.memory_space<smem>>) -> (i32, i32, i32) {
    %0 = arith.index_cast %arg0 : i32 to index
    %1 = memref.load %arg3[%0] : memref<2xi32, #tpu.memory_space<smem>>
    %c0_i32 = arith.constant 0 : i32
    %c0_i32_0 = arith.constant 0 : i32
    %c0_i32_1 = arith.constant 0 : i32
    return %1, %c0_i32, %c0_i32_0 : i32, i32, i32
  }
  func.func @transform_3(%arg0: i32, %arg1: i32, %arg2: memref<2xi32, #tpu.memory_space<smem>>, %arg3: memref<2xi32, #tpu.memory_space<smem>>) -> (i32, i32, i32) {
    %0 = arith.index_cast %arg0 : i32 to index
    %1 = memref.load %arg2[%0] : memref<2xi32, #tpu.memory_space<smem>>
    %c0_i32 = arith.constant 0 : i32
    %c0_i32_0 = arith.constant 0 : i32
    return %1, %c0_i32, %arg1 : i32, i32, i32
  }
}

</mosaic_0001>

<llo_original>
// kernel: tpu_custom_call.1
$region0: #{tpu_custom_call.1}
  #allocation0 [shape = 'u32[]', space=smem, size = 0x4, offset = 0x4, fixed_abs, tag = 'smem constant byte address 0x4 - core index']
  #allocation1 [shape = 'u32[144,128]{1,0:T(1,128)}', space=vmem, size = 0x12000, scoped, tag = 'internal scratch']
  #allocation2 [shape = 's32[1]{0}', space=sflag, size = 0x4, scoped, tag = 'scoped memory for tpu_custom_call.1']
  #allocation3 [shape = 'u8[512]{0}', space=smem, size = 0x200, scoped, tag = 'prefetched SMEM operand 0']
  #allocation4 [shape = 'u8[512]{0}', space=smem, size = 0x200, scoped, tag = 'prefetched SMEM operand 1']
  %s0 = inlined_call_operand.vmem [shape: s32[2], index: 0, kind: input, shape index: {}]
  %s1 = inlined_call_operand.vmem [shape: s32[2], index: 1, kind: input, shape index: {}]
  %s2 = inlined_call_operand.vmem [shape: f32[2,16,128], index: 2, kind: input, shape index: {}]
  %s3 = inlined_call_operand.vmem [shape: bf16[3,32,16], index: 3, kind: input, shape index: {}]
  %s4 = inlined_call_operand.vmem [shape: f32[3,32,1], index: 4, kind: input, shape index: {}]
  %s5 = inlined_call_operand.hbm [shape: bf16[2,32,128], index: 5, kind: output, shape index: {}]
  %s6 = sld [smem:[#allocation0]]
  $region45: #{tpu_custom_call.1} parent=0
    _
  %s8 = ssub.s32 1, %s6
  %s9 = scalar_select 0, %s8, %s6
  %s10 = sshll.u32 %s0, 4
  %s11 = int_to_ptr.vmem [resolvable:$true] %s10
  %13 = dma.vmem_to_smem %s11, 16, [#allocation3], [#allocation2]
  %s14 = sshll.u32 %s1, 4
  %s15 = int_to_ptr.vmem [resolvable:$true] %s14
  %17 = dma.vmem_to_smem %s15, 16, [#allocation4], [#allocation2]
  %18 = dma.done [#allocation2], 32
  %19 = sfence
  $region1: #{tpu_custom_call.1} parent=0
    #allocation5 [shape = 'u8[16384]{0}', space=vmem, size = 0x4000, scoped, tag = 'output window, operand 0']
    #allocation6 [shape = 's32[2]{0}', space=sflag, size = 0x8, scoped, tag = 'scoped memory for tpu_custom_call.1']
    %20 = vsyncpa [#allocation6], 0
    %s21 = scalar_lea.sflag [#allocation6], 1
    %22 = vsyncpa %s21, 0
    loop: start=0, step=1, limit=4
    $region2: #{tpu_custom_call.1} parent=1 // loop_pre_header
      _
    $region3: #{tpu_custom_call.1} parent=1 // loop_header
      %s24 = sphi 0, %s28
      %p25 = scmp.ge.s32.totalorder %s24, 4
      %s31 = sphi 0, %s43
      %s32 = sphi 0, %s39
      %s33 = sphi 0, %s31
      %s34 = sphi 0, %s32
      %s35 = sphi 0, %s33
      %s36 = sphi 0, %s34
      %s50 = sphi 0, %s52
      %s53 = sphi 0, %s50
      %s54 = sphi 0, %s53
      %s70 = sphi 0, %s54
      %s78 = sphi 0, %s80
      %s81 = sphi 0, %s78
      %s82 = sphi 0, %s81
      %s98 = sphi 0, %s82
      %s106 = sphi 0, %s108
      %s109 = sphi 0, %s106
      %s110 = sphi 0, %s109
      %s126 = sphi 0, %s110
      %s136 = sphi 0, %s138
      %s139 = sphi 0, %s136
      %s140 = sphi 0, %s139
      %s156 = sphi 0, %s140
    $region4: #{tpu_custom_call.1} parent=1 // loop_header_branch
      %27 = sbr.rel (%p25) target = $region8
    $region5: #{tpu_custom_call.1} parent=1 // loop_body
      %s29 = ssub.s32 %s24, 1
      %s30 = ssub.s32 %s24, 2
      %s37 = sadd.s32 1, %s32
      %p38 = scmp.ge.s32.totalorder %s37, 1
      %s39 = scalar_select %p38, 0, %s37
      %s40 = sadd.s32 1, %s31
      %s41 = scalar_select %p38, %s40, %s31
      %p42 = scmp.ge.s32.totalorder %s41, 2
      %s43 = scalar_select %p42, 0, %s41
      %s44 = sld [smem:[#allocation3 + %s31]]
      %s45 = sld [smem:[#allocation3 + %s43]]
      %s46 = ssub.s32 %s44, %s45
      %s47 = ssub.s32 %s32, %s39
      %s48 = sor.u32 %s46, %s47
      %p49 = scmp.eq.s32.totalorder %s48, 0
      %s51 = sadd.s32 %s50, 1
      %s52 = scalar_select %p49, %s50, %s51
      %p55 = pneg %p49
      %p56 = scmp.eq.s32.totalorder %s24, 1
      %p57 = por %p55, %p56
      %p58 = scmp.ne.s32.totalorder %s50, %s53
      %p59 = scmp.eq.s32.totalorder %s24, 0
      %p60 = por %p58, %p59
      %p61 = scmp.ne.s32.totalorder %s50, %s53
      %p62 = scmp.eq.s32.totalorder %s29, 1
      %p63 = por %p61, %p62
      %p64 = scmp.ne.s32.totalorder %s53, %s54
      %p65 = scmp.eq.s32.totalorder %s29, 0
      %p66 = por %p64, %p65
      %p67 = scmp.ne.s32.totalorder %s53, %s54
      %p68 = scmp.eq.s32.totalorder %s30, 1
      %p69 = por %p67, %p68
      %p71 = scmp.ne.s32.totalorder %s54, %s70
      %p72 = scmp.eq.s32.totalorder %s30, 0
      %p73 = por %p71, %p72
      %s74 = sld [smem:[#allocation4 + %s31]]
      %s75 = sld [smem:[#allocation4 + %s43]]
      %s76 = ssub.s32 %s74, %s75
      %p77 = scmp.eq.s32.totalorder %s76, 0
      %s79 = sadd.s32 %s78, 1
      %s80 = scalar_select %p77, %s78, %s79
      %p83 = pneg %p77
      %p84 = scmp.eq.s32.totalorder %s24, 1
      %p85 = por %p83, %p84
      %p86 = scmp.ne.s32.totalorder %s78, %s81
      %p87 = scmp.eq.s32.totalorder %s24, 0
      %p88 = por %p86, %p87
      %p89 = scmp.ne.s32.totalorder %s78, %s81
      %p90 = scmp.eq.s32.totalorder %s29, 1
      %p91 = por %p89, %p90
      %p92 = scmp.ne.s32.totalorder %s81, %s82
      %p93 = scmp.eq.s32.totalorder %s29, 0
      %p94 = por %p92, %p93
      %p95 = scmp.ne.s32.totalorder %s81, %s82
      %p96 = scmp.eq.s32.totalorder %s30, 1
      %p97 = por %p95, %p96
      %p99 = scmp.ne.s32.totalorder %s82, %s98
      %p100 = scmp.eq.s32.totalorder %s30, 0
      %p101 = por %p99, %p100
      %s102 = sld [smem:[#allocation4 + %s31]]
      %s103 = sld [smem:[#allocation4 + %s43]]
      %s104 = ssub.s32 %s102, %s103
      %p105 = scmp.eq.s32.totalorder %s104, 0
      %s107 = sadd.s32 %s106, 1
      %s108 = scalar_select %p105, %s106, %s107
      %p111 = pneg %p105
      %p112 = scmp.eq.s32.totalorder %s24, 1
      %p113 = por %p111, %p112
      %p114 = scmp.ne.s32.totalorder %s106, %s109
      %p115 = scmp.eq.s32.totalorder %s24, 0
      %p116 = por %p114, %p115
      %p117 = scmp.ne.s32.totalorder %s106, %s109
      %p118 = scmp.eq.s32.totalorder %s29, 1
      %p119 = por %p117, %p118
      %p120 = scmp.ne.s32.totalorder %s109, %s110
      %p121 = scmp.eq.s32.totalorder %s29, 0
      %p122 = por %p120, %p121
      %p123 = scmp.ne.s32.totalorder %s109, %s110
      %p124 = scmp.eq.s32.totalorder %s30, 1
      %p125 = por %p123, %p124
      %p127 = scmp.ne.s32.totalorder %s110, %s126
      %p128 = scmp.eq.s32.totalorder %s30, 0
      %p129 = por %p127, %p128
      %s130 = sld [smem:[#allocation3 + %s31]]
      %s131 = sld [smem:[#allocation3 + %s43]]
      %s132 = ssub.s32 %s130, %s131
      %s133 = ssub.s32 %s32, %s39
      %s134 = sor.u32 %s132, %s133
      %p135 = scmp.eq.s32.totalorder %s134, 0
      %s137 = sadd.s32 %s136, 1
      %s138 = scalar_select %p135, %s136, %s137
      %p141 = pneg %p135
      %p142 = scmp.eq.s32.totalorder %s24, 1
      %p143 = por %p141, %p142
      %p144 = scmp.ne.s32.totalorder %s136, %s139
      %p145 = scmp.eq.s32.totalorder %s24, 0
      %p146 = por %p144, %p145
      %p147 = scmp.ne.s32.totalorder %s136, %s139
      %p148 = scmp.eq.s32.totalorder %s29, 1
      %p149 = por %p147, %p148
      %p150 = scmp.ne.s32.totalorder %s139, %s140
      %p151 = scmp.eq.s32.totalorder %s29, 0
      %p152 = por %p150, %p151
      %p153 = scmp.ne.s32.totalorder %s139, %s140
      %p154 = scmp.eq.s32.totalorder %s30, 1
      %p155 = por %p153, %p154
      %p157 = scmp.ne.s32.totalorder %s140, %s156
      %p158 = scmp.eq.s32.totalorder %s30, 0
      %p159 = por %p157, %p158
      %p160 = scmp.le.s32.totalorder 1, %s24
      %p161 = scmp.lt.s32.totalorder %s24, 3
      %p162 = pnand %p160, %p161
      %p163 = pneg %p162
      // Predicated region
      $region9: #{tpu_custom_call.1} parent=5 // pred_check
        _
      $region10: #{tpu_custom_call.1} parent=5 // pred_check_branch
        %165 = sbr.rel (%p162) target = $region12
      $region11: #{tpu_custom_call.1} parent=5 // pred_region
        %s166 = ssub.s32 %s24, 1
      $region12: #{tpu_custom_call.1} parent=5 // pred_fallthru
        _
      %p167 = scmp.lt.s32.totalorder %s24, 2
      // Predicated region
      $region13: #{tpu_custom_call.1} parent=5 // pred_check
        %p168 = pneg %p167
      $region14: #{tpu_custom_call.1} parent=5 // pred_check_branch
        %170 = sbr.rel (%p168) target = $region16
      $region15: #{tpu_custom_call.1} parent=5 // pred_region
        // Predicated region
        $region17: #{tpu_custom_call.1} parent=15 // pred_check
          %p171 = pneg %p60
        $region18: #{tpu_custom_call.1} parent=15 // pred_check_branch
          %173 = sbr.rel (%p171) target = $region20
        $region19: #{tpu_custom_call.1} parent=15 // pred_region
          %s174 = sld [smem:[#allocation3 + %s31]]
          %p175 = scmp.lt.s32.totalorder %s174, 1
          %s176 = scalar_select %p175, %s174, 1
          %p177 = scmp.lt.s32.totalorder %s32, 0
          %s178 = scalar_select %p177, %s32, 0
          %s179 = smul.addr %s176, 2
          %s180 = sadd.s32 %s178, %s179
          %s181 = smul.addr %s180, 8
          %s182 = scalar_lea.vmem %s2, %s181
          %s183 = sld [smem:[#allocation3 + %s31]]
        $region20: #{tpu_custom_call.1} parent=15 // pred_fallthru
          _
        // Predicated region
        $region21: #{tpu_custom_call.1} parent=15 // pred_check
          %p184 = pneg %p88
        $region22: #{tpu_custom_call.1} parent=15 // pred_check_branch
          %186 = sbr.rel (%p184) target = $region24
        $region23: #{tpu_custom_call.1} parent=15 // pred_region
          %s187 = sld [smem:[#allocation4 + %s31]]
          %p188 = scmp.lt.s32.totalorder %s187, 2
          %s189 = scalar_select %p188, %s187, 2
          %s190 = smul.addr %s189, 4
          %s191 = smul.addr %s190, 4
          %s192 = scalar_lea.vmem %s3, %s191
          %s193 = sld [smem:[#allocation4 + %s31]]
        $region24: #{tpu_custom_call.1} parent=15 // pred_fallthru
          _
        // Predicated region
        $region25: #{tpu_custom_call.1} parent=15 // pred_check
          %p194 = pneg %p116
        $region26: #{tpu_custom_call.1} parent=15 // pred_check_branch
          %196 = sbr.rel (%p194) target = $region28
        $region27: #{tpu_custom_call.1} parent=15 // pred_region
          %s197 = sld [smem:[#allocation4 + %s31]]
          %p198 = scmp.lt.s32.totalorder %s197, 2
          %s199 = scalar_select %p198, %s197, 2
          %s200 = smul.addr %s199, 4
          %s201 = smul.addr %s200, 8
          %s202 = scalar_lea.vmem %s4, %s201
          %s203 = sld [smem:[#allocation4 + %s31]]
        $region28: #{tpu_custom_call.1} parent=15 // pred_fallthru
          _
      $region16: #{tpu_custom_call.1} parent=5 // pred_fallthru
        _
      %p204 = scmp.le.s32.totalorder 1, %s24
      %p205 = scmp.lt.s32.totalorder %s24, 3
      %p206 = pnand %p204, %p205
      %p207 = pneg %p206
      // Predicated region
      $region29: #{tpu_custom_call.1} parent=5 // pred_check
        _
      $region30: #{tpu_custom_call.1} parent=5 // pred_check_branch
        %209 = sbr.rel (%p206) target = $region32
      $region31: #{tpu_custom_call.1} parent=5 // pred_region
        %s210 = ssub.s32 %s24, 1
        %s211 = sld [smem:[#allocation3 + %s33]]
        %p212 = scmp.lt.s32.totalorder %s211, 1
        %s213 = scalar_select %p212, %s211, 1
        %p214 = scmp.lt.s32.totalorder %s34, 0
        %s215 = scalar_select %p214, %s34, 0
        %s216 = smul.addr %s213, 2
        %s217 = sadd.s32 %s215, %s216
        %s218 = smul.addr %s217, 8
        %s219 = scalar_lea.vmem %s2, %s218
        %p220 = pneg %p66
        %p221 = pneg %p63
        %s222 = sld [smem:[#allocation4 + %s33]]
        %p223 = scmp.lt.s32.totalorder %s222, 2
        %s224 = scalar_select %p223, %s222, 2
        %s225 = smul.addr %s224, 4
        %s226 = smul.addr %s225, 4
        %s227 = scalar_lea.vmem %s3, %s226
        %p228 = pneg %p94
        %p229 = pneg %p91
        %s230 = sld [smem:[#allocation4 + %s33]]
        %p231 = scmp.lt.s32.totalorder %s230, 2
        %s232 = scalar_select %p231, %s230, 2
        %s233 = smul.addr %s232, 4
        %s234 = smul.addr %s233, 8
        %s235 = scalar_lea.vmem %s4, %s234
        %p236 = pneg %p122
        %p237 = pneg %p119
        %p238 = pneg %p152
        %p239 = pneg %p149
        %s240 = sand.u32 %s139, 1
        %s241 = scalar_lea.sflag [#allocation6], %s240
        %s242 = sand.u32 %s139, 1
        %s243 = smul.addr %s242, 16
        %s244 = scalar_lea.vmem [#allocation5], %s243
        %s245 = sld [smem:[#allocation3 + %s33]]
        %p246 = scmp.lt.s32.totalorder %s245, 1
        %s247 = scalar_select %p246, %s245, 1
        %p248 = scmp.lt.s32.totalorder %s34, 0
        %s249 = scalar_select %p248, %s34, 0
        %s250 = smul.addr %s247, 2
        %s251 = sadd.s32 %s249, %s250
        %s252 = smul.addr %s251, 8
        %s253 = scalar_lea.vmem %s2, %s252
        %s254 = sld [smem:[#allocation3 + %s33]]
        %s255 = sld [smem:[#allocation4 + %s33]]
        %p256 = scmp.lt.s32.totalorder %s255, 2
        %s257 = scalar_select %p256, %s255, 2
        %s258 = smul.addr %s257, 4
        %s259 = smul.addr %s258, 4
        %s260 = scalar_lea.vmem %s3, %s259
        %s261 = sld [smem:[#allocation4 + %s33]]
        %s262 = sld [smem:[#allocation4 + %s33]]
        %p263 = scmp.lt.s32.totalorder %s262, 2
        %s264 = scalar_select %p263, %s262, 2
        %s265 = smul.addr %s264, 4
        %s266 = smul.addr %s265, 8
        %s267 = scalar_lea.vmem %s4, %s266
        %s268 = sld [smem:[#allocation4 + %s33]]
        %s269 = sld [smem:[#allocation3 + %s33]]
        %v271 = vld [vmem:[%s253] sm:$0xff]
        %v272 = vld [vmem:[%s253 + $0x8] sm:$0xff]
        %v273 = vpack.c.bf16 %v272, %v271
        %v274 = vld [vmem:[%s260] sm:$0xf]
        %v275 = vld [vmem:[%s260 + $0x4] sm:$0xf]
        %v276 = vld [vmem:[%s260 + $0x8] sm:$0xf]
        %v277 = vld [vmem:[%s260 + $0xc] sm:$0xf]
        %v278 = vld [vmem:[%s267] sm:$0xff]
        %v279 = vld [vmem:[%s267 + $0x8] sm:$0xff]
        %v280 = vld [vmem:[%s267 + $0x10] sm:$0xff]
        %v281 = vld [vmem:[%s267 + $0x18] sm:$0xff]
        %283 = vset.pattern.permute.xlu0 0
        %284 = vperm.xlu0 %283, %v278
        %v285 = vpop.permute.xlu0 %284
        %288 = vset.pattern.permute.xlu0 0
        %289 = vperm.xlu0 %288, %v279
        %v290 = vpop.permute.xlu0 %289
        %293 = vset.pattern.permute.xlu0 0
        %294 = vperm.xlu0 %293, %v280
        %v295 = vpop.permute.xlu0 %294
        %298 = vset.pattern.permute.xlu0 0
        %299 = vperm.xlu0 %298, %v281
        %v300 = vpop.permute.xlu0 %299
        %v306 = vunpack.c.l.b16 %v274
        %v307 = vunpack.c.l.b16 %v275
        %v308 = vunpack.c.l.b16 %v276
        %v309 = vunpack.c.l.b16 %v277
        %v310 = vpack.c.b16 %v307, %v306
        %v311 = vpack.c.b16 %v309, %v308
        %vm312 = vcmask 130048
        %v314 = vsel %vm312, %v310, 0
        %v317 = vsel %vm312, %v311, 0
        %319 = vmatprep.subr.bf16.mxu0 0
        %320 = vmatpush1.bf16.msra.mxu0 %v273
        %321 = vmatprep.subr.bf16.mxu0 0
        %322 = vmatpush1.bf16.msra.mxu0 0
        %323 = vmatprep.subr.bf16.mxu0 0
        %324 = vmatpush1.bf16.msra.mxu0 0
        %325 = vmatprep.subr.bf16.mxu0 0
        %326 = vmatpush1.bf16.msra.mxu0 0
        %327 = vmatprep.subr.bf16.mxu0 0
        %328 = vmatpush1.bf16.msra.mxu0 0
        %329 = vmatprep.subr.bf16.mxu0 0
        %330 = vmatpush1.bf16.msra.mxu0 0
        %331 = vmatprep.subr.bf16.mxu0 0
        %332 = vmatpush1.bf16.msra.mxu0 0
        %333 = vmatprep.subr.bf16.mxu0 0
        %334 = vmatpush1.bf16.msra.mxu0 0
        %335 = vmatprep.subr.bf16.mxu0 0
        %336 = vmatpush1.bf16.msra.mxu0 0
        %337 = vmatprep.subr.bf16.mxu0 0
        %338 = vmatpush1.bf16.msra.mxu0 0
        %339 = vmatprep.subr.bf16.mxu0 0
        %340 = vmatpush1.bf16.msra.mxu0 0
        %341 = vmatprep.subr.bf16.mxu0 0
        %342 = vmatpush1.bf16.msra.mxu0 0
        %343 = vmatprep.subr.bf16.mxu0 0
        %344 = vmatpush1.bf16.msra.mxu0 0
        %345 = vmatprep.subr.bf16.mxu0 0
        %346 = vmatpush1.bf16.msra.mxu0 0
        %347 = vmatprep.subr.bf16.mxu0 0
        %348 = vmatpush1.bf16.msra.mxu0 0
        %349 = vmatprep.subr.bf16.mxu0 0
        %350 = vmatpush1.bf16.msra.mxu0 0
        %351 = vmatprep.mubr.bf16.mxu0 0
        %352 = vmatmul.mubr.bf16.gmra.mrb[0].mxu0 %v314
        %v353 = vpop.f32.mrb[0].mxu0
        %v354 = vadd.f32 %v285, %v353
        %v355 = vpop.f32.mrb[0].mxu0
        %v356 = vpop.f32.mrb[0].mxu0
        %v357 = vadd.f32 %v290, %v356
        %v358 = vpop.f32.mrb[0].mxu0
        %359 = vmatprep.mubr.bf16.mxu0 0
        %360 = vmatmul.mubr.bf16.gmra.mrb[0].mxu0 %v317
        %v361 = vpop.f32.mrb[0].mxu0
        %v362 = vadd.f32 %v295, %v361
        %v363 = vpop.f32.mrb[0].mxu0
        %v364 = vpop.f32.mrb[0].mxu0
        %v365 = vadd.f32 %v300, %v364
        %v366 = vpop.f32.mrb[0].mxu0
        %367 = vdwg.mxu0
        %v368 = vpack.c.bf16 %v357, %v354
        %v369 = vpack.c.bf16 %v365, %v362
        %v372 = vunpack.c.l.b16 %v368
        %v373 = vunpack.c.h.b16 %v368
        %v374 = vunpack.c.l.b16 %v369
        %v375 = vunpack.c.h.b16 %v369
        %v376 = vpack.c.b16 %v372, %v372
        %v377 = vpack.c.b16 %v373, %v373
        %v378 = vpack.c.b16 %v374, %v374
        %v379 = vpack.c.b16 %v375, %v375
        %384 = vst [vmem:[%s244] sm:$0xf] %v376
        %385 = vst [vmem:[%s244 + $0x4] sm:$0xf] %v377
        %386 = vst [vmem:[%s244 + $0x8] sm:$0xf] %v378
        %387 = vst [vmem:[%s244 + $0xc] sm:$0xf] %v379
        %s388 = sand.u32 %s139, 1
        %s389 = scalar_lea.sflag [#allocation6], %s388
        %s390 = sand.u32 %s139, 1
        %s391 = smul.addr %s390, 16
        %s392 = scalar_lea.vmem [#allocation5], %s391
        // Predicated region
        $region33: #{tpu_custom_call.1} parent=31 // pred_check
          %p393 = pneg %p149
        $region34: #{tpu_custom_call.1} parent=31 // pred_check_branch
          %395 = sbr.rel (%p393) target = $region36
        $region35: #{tpu_custom_call.1} parent=31 // pred_region
          %s396 = sld [smem:[#allocation3 + %s33]]
          %s398 = ssub.s32 256, 256
          %399 = vsyncadd %s389, %s398
          %s400 = smul.addr %s396, 4
          %s401 = sadd.s32 %s34, %s400
          %s402 = smul.addr %s401, 64
          %s403 = scalar_lea.hbm %s5, %s402
          %s404 = sshll.u32 %s392, 4
          %s405 = int_to_ptr.vmem [resolvable:$true] %s404
          %410 = dma.vmem_to_hbm [thread:$0]  %s405, 256, %s403, %s389, 64, 64, 4
        $region36: #{tpu_custom_call.1} parent=31 // pred_fallthru
          _
      $region32: #{tpu_custom_call.1} parent=5 // pred_fallthru
        _
      %p411 = scmp.le.s32.totalorder 2, %s24
      // Predicated region
      $region37: #{tpu_custom_call.1} parent=5 // pred_check
        %p412 = pneg %p411
      $region38: #{tpu_custom_call.1} parent=5 // pred_check_branch
        %414 = sbr.rel (%p412) target = $region40
      $region39: #{tpu_custom_call.1} parent=5 // pred_region
        %s415 = ssub.s32 %s24, 2
        // Predicated region
        $region41: #{tpu_custom_call.1} parent=39 // pred_check
          %p416 = pneg %p155
        $region42: #{tpu_custom_call.1} parent=39 // pred_check_branch
          %418 = sbr.rel (%p416) target = $region44
        $region43: #{tpu_custom_call.1} parent=39 // pred_region
          %s419 = sand.u32 %s140, 1
          %s420 = scalar_lea.sflag [#allocation6], %s419
          %s421 = sand.u32 %s140, 1
          %s422 = smul.addr %s421, 16
          %s423 = scalar_lea.vmem [#allocation5], %s422
          %424 = dma.done %s420, 256
        $region44: #{tpu_custom_call.1} parent=39 // pred_fallthru
          _
      $region40: #{tpu_custom_call.1} parent=5 // pred_fallthru
        _
    $region6: #{tpu_custom_call.1} parent=1 // loop_footer
      %s28 = sadd.s32 1, %s24
    $region7: #{tpu_custom_call.1} parent=1 // loop_footer_branch
      %23 = sbr.rel target = $region3
    $region8: #{tpu_custom_call.1} parent=1 // loop_exit
      _
    %425 = vsyncpa [#allocation6], 1
    %s426 = scalar_lea.sflag [#allocation6], 1
    %427 = vsyncpa %s426, 1

</llo_original>
